<compile_context>
chip_gen: v5e
topology: v5e:2x2
jax: 0.10.0
libtpu: 0.0.40
codegen_flags: <defaults>
</compile_context>

<pallas_src>
import jax
import jax.numpy as jnp
from jax.experimental import pallas as pl
from jax.experimental.pallas import tpu as pltpu

ALPHA = 0.5
SMOOTH = 1e-6


def _pick_tr_max():
    # Rows of 128 lanes per block.  TR=4096 -> ~12 MiB double-buffered
    # (f32 preds + i32 targets); fits v6e/v7x comfortably with the explicit
    # vmem limit below.  Fall back to 2048 on v5e-class / unknown parts.
    try:
        kind = jax.devices()[0].device_kind.lower()
    except Exception:
        return 2048
    if any(tag in kind for tag in ("v6", "v7", "7x", "v4")):
        return 4096
    return 2048


def _make_kernel(hw, tr, nt, needs_mask):
    """Builds the per-tile kernel. hw/tr/nt/needs_mask are trace-time static."""

    def _tile_partials(p_ref, t_ref, ce_ref, inter_ref, union_ref, masked):
        l0 = p_ref[0, 0]          # (TR, 128) f32 class-0 logits
        l1 = p_ref[0, 1]          # (TR, 128) f32 class-1 logits
        t_is1 = t_ref[0] > 0      # (TR, 128) bool

        if masked:
            j = pl.program_id(1)
            rows = jax.lax.broadcasted_iota(jnp.int32, (tr, 128), 0) + j * tr
            lanes = jax.lax.broadcasted_iota(jnp.int32, (tr, 128), 1)
            valid = rows * 128 + lanes < hw            # hw is static
            # Zero garbage bits BEFORE the transcendentals (pad / OOB rows).
            l0 = jnp.where(valid, l0, 0.0)
            l1 = jnp.where(valid, l1, 0.0)
            t_is1 = jnp.logical_and(t_is1, valid)

        tf = t_is1.astype(jnp.float32)

        # 2-class cross entropy == softplus of the (wrong - right) margin.
        diff = l0 - l1
        d = jnp.where(t_is1, diff, -diff)
        ce = jnp.maximum(d, 0.0) + jnp.log(1.0 + jnp.exp(-jnp.abs(diff)))
        # tanh-form sigmoid: one EUP op, no divide.
        p = 0.5 * jnp.tanh(0.5 * l1) + 0.5

        if masked:
            validf = valid.astype(jnp.float32)
            ce = ce * validf
            p = p * validf

        # Lane-wise (sublane) partial sums only; cross-lane / cross-tile
        # combine and the final loss arithmetic happen outside the kernel.
        ce_ref[0, 0] = jnp.sum(ce, axis=0, keepdims=True)
        inter_ref[0, 0] = jnp.sum(jnp.where(t_is1, p, 0.0), axis=0,
                                  keepdims=True)
        union_ref[0, 0] = jnp.sum(p + tf, axis=0, keepdims=True)

    def kernel(p_ref, t_ref, ce_ref, inter_ref, union_ref):
        if not needs_mask:
            _tile_partials(p_ref, t_ref, ce_ref, inter_ref, union_ref, False)
        elif nt == 1:
            _tile_partials(p_ref, t_ref, ce_ref, inter_ref, union_ref, True)
        else:
            # Only the last row tile can contain pad / out-of-range elements.
            j = pl.program_id(1)
            last = nt - 1

            @pl.when(j == last)
            def _():
                _tile_partials(p_ref, t_ref, ce_ref, inter_ref, union_ref,
                               True)

            @pl.when(j != last)
            def _():
                _tile_partials(p_ref, t_ref, ce_ref, inter_ref, union_ref,
                               False)

    return kernel


@jax.jit
def hybrid_loss(preds, targets):
    """preds: [B, 2, H, W] float logits; targets: [B, H, W] integer labels."""
    B, C, H, W = preds.shape
    assert C == 2, "HybridLoss kernel expects 2-class logits [B, 2, H, W]"
    HW = H * W
    n = B * HW

    preds = preds.astype(jnp.float32)
    # Keep targets narrow (1-2 B/elem HBM traffic) when they already are.
    if targets.dtype == jnp.bool_:
        targets = targets.astype(jnp.int8)
    elif targets.dtype not in (jnp.int8, jnp.uint8, jnp.int16, jnp.int32):
        targets = targets.astype(jnp.int32)

    # Free reshapes; a pad copy only happens when H*W % 128 != 0 (the tail is
    # re-excluded in-kernel via the iota mask).
    hw_pad = ((HW + 127) // 128) * 128
    preds3 = preds.reshape(B, 2, HW)
    tgt2 = targets.reshape(B, HW)
    if hw_pad != HW:
        preds3 = jnp.pad(preds3, ((0, 0), (0, 0), (0, hw_pad - HW)))
        tgt2 = jnp.pad(tgt2, ((0, 0), (0, hw_pad - HW)))

    R = hw_pad // 128
    preds4 = preds3.reshape(B, 2, R, 128)
    tgt3 = tgt2.reshape(B, R, 128)

    tr_max = _pick_tr_max()
    TR = R if R <= tr_max else tr_max       # full extent, or a multiple of 32
    NT = (R + TR - 1) // TR
    needs_mask = (hw_pad != HW) or (R % TR != 0)

    kernel = _make_kernel(HW, TR, NT, needs_mask)

    tgt_bytes = tgt3.dtype.itemsize
    cost = pl.CostEstimate(
        flops=15 * n, transcendentals=3 * n,
        bytes_accessed=(8 + tgt_bytes) * n + B * NT * 3 * 128 * 4)

    # BlockSpec double-buffers each input: budget 2 x (preds + target) blocks.
    blk_bytes = TR * 128 * (2 * 4 + tgt_bytes)
    vmem_limit = int(min(max(2 * blk_bytes + (8 << 20), 16 << 20), 48 << 20))

    out_block = pl.BlockSpec((1, 1, 1, 128), lambda b, j: (b, j, 0, 0))
    grid_spec = pltpu.PrefetchScalarGridSpec(
        num_scalar_prefetch=0,
        grid=(B, NT),
        in_specs=[
            pl.BlockSpec((1, 2, TR, 128), lambda b, j: (b, 0, j, 0)),
            pl.BlockSpec((1, TR, 128), lambda b, j: (b, j, 0)),
        ],
        out_specs=[out_block, out_block, out_block],
    )

    part_shape = jax.ShapeDtypeStruct((B, NT, 1, 128), jnp.float32)
    ce_p, inter_p, union_p = pl.pallas_call(
        kernel,
        out_shape=(part_shape, part_shape, part_shape),
        grid_spec=grid_spec,
        compiler_params=pltpu.CompilerParams(
            dimension_semantics=("parallel", "parallel"),
            vmem_limit_bytes=vmem_limit),
        cost_estimate=cost,
    )(preds4, tgt3)

    # Tiny epilogue in plain JAX: cross-lane / cross-tile combine + loss.
    ce = jnp.sum(ce_p) / n                              # count is static
    inter = jnp.sum(inter_p)
    union = jnp.sum(union_p)
    dice_loss = 1.0 - (2.0 * inter + SMOOTH) / (union + SMOOTH)
    return ALPHA * ce + (1.0 - ALPHA) * dice_loss


def hybrid_loss_ref(preds, targets):
    """Pure-JAX reference mirroring the PyTorch HybridLoss forward."""
    preds = preds.astype(jnp.float32)
    logp = jax.nn.log_softmax(preds, axis=1)                 # [B, 2, H, W]
    t = targets.astype(jnp.int32)
    ce = -jnp.mean(jnp.take_along_axis(logp, t[:, None, :, :], axis=1))
    p = jax.nn.sigmoid(preds[:, 1, :, :]).reshape(-1)
    tf = targets.astype(jnp.float32).reshape(-1)
    inter = jnp.sum(p * tf)
    union = jnp.sum(p) + jnp.sum(tf)
    dice = 1.0 - (2.0 * inter + SMOOTH) / (union + SMOOTH)
    return ALPHA * ce + (1.0 - ALPHA) * dice


if __name__ == "__main__":
    key = jax.random.PRNGKey(0)
    k1, k2, k3, k4 = jax.random.split(key, 4)

    # Primary small test (lane-aligned: H*W % 128 == 0, fast path only).
    B, H, W = 2, 16, 16
    preds = jax.random.normal(k1, (B, 2, H, W), dtype=jnp.float32)
    targets = jax.random.bernoulli(k2, 0.5, (B, H, W)).astype(jnp.int32)
    out = hybrid_loss(preds, targets)
    jax.block_until_ready(out)
    ref = hybrid_loss_ref(preds, targets)
    assert jnp.allclose(out, ref, rtol=1e-5, atol=1e-5), (out, ref)

    # Ragged test (H*W % 128 != 0) exercising the in-kernel tail mask.
    B2, H2, W2 = 2, 12, 12
    preds2 = jax.random.normal(k3, (B2, 2, H2, W2), dtype=jnp.float32)
    targets2 = jax.random.bernoulli(k4, 0.5, (B2, H2, W2)).astype(jnp.int32)
    out2 = hybrid_loss(preds2, targets2)
    jax.block_until_ready(out2)
    ref2 = hybrid_loss_ref(preds2, targets2)
    assert jnp.allclose(out2, ref2, rtol=1e-5, atol=1e-5), (out2, ref2)

    print("KERNEL_OK")
</pallas_src>

<mosaic_0001>
module attributes {stable_mosaic.version = 11 : i64} {
  func.func @kernel(%arg0: i32, %arg1: i32, %arg2: memref<1x2x2x128xf32, #tpu.memory_space<vmem>>, %arg3: memref<1x2x128xi32, #tpu.memory_space<vmem>>, %arg4: memref<1x1x1x128xf32, #tpu.memory_space<vmem>>, %arg5: memref<1x1x1x128xf32, #tpu.memory_space<vmem>>, %arg6: memref<1x1x1x128xf32, #tpu.memory_space<vmem>>) attributes {dimension_semantics = [#tpu.dimension_semantics<parallel>, #tpu.dimension_semantics<parallel>], iteration_bounds = array<i64: 2, 1>, scalar_prefetch = 0 : i64, scratch_operands = 0 : i64, tpu.core_type = #tpu.core_type<tc>, window_params = [{transform_indices = @transform_0, window_bounds = array<i64: 1, 2, 2, 128>}, {transform_indices = @transform_1, window_bounds = array<i64: 1, 2, 128>}, {transform_indices = @transform_2, window_bounds = array<i64: 1, 1, 1, 128>}, {transform_indices = @transform_3, window_bounds = array<i64: 1, 1, 1, 128>}, {transform_indices = @transform_4, window_bounds = array<i64: 1, 1, 1, 128>}]} {
    %c0 = arith.constant 0 : index
    %c0_0 = arith.constant 0 : index
    %c0_1 = arith.constant 0 : index
    %c0_2 = arith.constant 0 : index
    %0 = vector.load %arg2[%c0, %c0_0, %c0_1, %c0_2] : memref<1x2x2x128xf32, #tpu.memory_space<vmem>>, vector<1x1x2x128xf32>
    %1 = vector.shape_cast %0 : vector<1x1x2x128xf32> to vector<2x128xf32>
    %c0_3 = arith.constant 0 : index
    %c1 = arith.constant 1 : index
    %c0_4 = arith.constant 0 : index
    %c0_5 = arith.constant 0 : index
    %2 = vector.load %arg2[%c0_3, %c1, %c0_4, %c0_5] : memref<1x2x2x128xf32, #tpu.memory_space<vmem>>, vector<1x1x2x128xf32>
    %3 = vector.shape_cast %2 : vector<1x1x2x128xf32> to vector<2x128xf32>
    %c0_6 = arith.constant 0 : index
    %c0_7 = arith.constant 0 : index
    %c0_8 = arith.constant 0 : index
    %4 = vector.load %arg3[%c0_6, %c0_7, %c0_8] : memref<1x2x128xi32, #tpu.memory_space<vmem>>, vector<1x2x128xi32>
    %5 = vector.shape_cast %4 : vector<1x2x128xi32> to vector<2x128xi32>
    %c0_i32 = arith.constant 0 : i32
    %6 = vector.broadcast %c0_i32 : i32 to vector<2x128xi32>
    %7 = arith.cmpi sgt, %5, %6 : vector<2x128xi32>
    %8 = arith.extui %7 : vector<2x128xi1> to vector<2x128xi32>
    %9 = arith.sitofp %8 : vector<2x128xi32> to vector<2x128xf32>
    %10 = arith.subf %1, %3 : vector<2x128xf32>
    %cst = arith.constant 0.000000e+00 : f32
    %11 = vector.broadcast %cst : f32 to vector<2x128xf32>
    %12 = arith.subf %11, %10 : vector<2x128xf32>
    %13 = arith.select %7, %10, %12 : vector<2x128xi1>, vector<2x128xf32>
    %cst_9 = arith.constant 0.000000e+00 : f32
    %14 = vector.broadcast %cst_9 : f32 to vector<2x128xf32>
    %15 = arith.maximumf %13, %14 : vector<2x128xf32>
    %16 = math.absf %10 : vector<2x128xf32>
    %cst_10 = arith.constant 0.000000e+00 : f32
    %17 = vector.broadcast %cst_10 : f32 to vector<2x128xf32>
    %18 = arith.subf %17, %16 : vector<2x128xf32>
    %19 = math.exp %18 : vector<2x128xf32>
    %cst_11 = arith.constant 1.000000e+00 : f32
    %20 = vector.broadcast %cst_11 : f32 to vector<2x128xf32>
    %21 = arith.addf %20, %19 : vector<2x128xf32>
    %22 = math.log %21 : vector<2x128xf32>
    %23 = arith.addf %15, %22 : vector<2x128xf32>
    %cst_12 = arith.constant 5.000000e-01 : f32
    %24 = vector.broadcast %cst_12 : f32 to vector<2x128xf32>
    %25 = arith.mulf %24, %3 : vector<2x128xf32>
    %26 = math.tanh %25 : vector<2x128xf32>
    %cst_13 = arith.constant 5.000000e-01 : f32
    %27 = vector.broadcast %cst_13 : f32 to vector<2x128xf32>
    %28 = arith.mulf %27, %26 : vector<2x128xf32>
    %cst_14 = arith.constant 5.000000e-01 : f32
    %29 = vector.broadcast %cst_14 : f32 to vector<2x128xf32>
    %30 = arith.addf %28, %29 : vector<2x128xf32>
    %cst_15 = arith.constant dense<0.000000e+00> : vector<128xf32>
    %31 = vector.multi_reduction <add>, %23, %cst_15 [0] : vector<2x128xf32> to vector<128xf32>
    %32 = vector.shape_cast %31 : vector<128xf32> to vector<1x128xf32>
    %c0_16 = arith.constant 0 : index
    %c0_17 = arith.constant 0 : index
    %c0_18 = arith.constant 0 : index
    %c0_19 = arith.constant 0 : index
    %33 = vector.load %arg4[%c0_16, %c0_17, %c0_18, %c0_19] : memref<1x1x1x128xf32, #tpu.memory_space<vmem>>, vector<1x1x1x128xf32>
    %34 = vector.shape_cast %33 : vector<1x1x1x128xf32> to vector<1x128xf32>
    %35 = vector.shape_cast %32 : vector<1x128xf32> to vector<1x1x1x128xf32>
    tpu.vector_store %arg4[%c0_16, %c0_17, %c0_18, %c0_19], %35 {strides = array<i32>} : memref<1x1x1x128xf32, #tpu.memory_space<vmem>>, vector<1x1x1x128xf32>,
    %cst_20 = arith.constant 0.000000e+00 : f32
    %36 = vector.broadcast %cst_20 : f32 to vector<2x128xf32>
    %37 = arith.select %7, %30, %36 : vector<2x128xi1>, vector<2x128xf32>
    %cst_21 = arith.constant dense<0.000000e+00> : vector<128xf32>
    %38 = vector.multi_reduction <add>, %37, %cst_21 [0] : vector<2x128xf32> to vector<128xf32>
    %39 = vector.shape_cast %38 : vector<128xf32> to vector<1x128xf32>
    %c0_22 = arith.constant 0 : index
    %c0_23 = arith.constant 0 : index
    %c0_24 = arith.constant 0 : index
    %c0_25 = arith.constant 0 : index
    %40 = vector.load %arg5[%c0_22, %c0_23, %c0_24, %c0_25] : memref<1x1x1x128xf32, #tpu.memory_space<vmem>>, vector<1x1x1x128xf32>
    %41 = vector.shape_cast %40 : vector<1x1x1x128xf32> to vector<1x128xf32>
    %42 = vector.shape_cast %39 : vector<1x128xf32> to vector<1x1x1x128xf32>
    tpu.vector_store %arg5[%c0_22, %c0_23, %c0_24, %c0_25], %42 {strides = array<i32>} : memref<1x1x1x128xf32, #tpu.memory_space<vmem>>, vector<1x1x1x128xf32>,
    %43 = arith.addf %30, %9 : vector<2x128xf32>
    %cst_26 = arith.constant dense<0.000000e+00> : vector<128xf32>
    %44 = vector.multi_reduction <add>, %43, %cst_26 [0] : vector<2x128xf32> to vector<128xf32>
    %45 = vector.shape_cast %44 : vector<128xf32> to vector<1x128xf32>
    %c0_27 = arith.constant 0 : index
    %c0_28 = arith.constant 0 : index
    %c0_29 = arith.constant 0 : index
    %c0_30 = arith.constant 0 : index
    %46 = vector.load %arg6[%c0_27, %c0_28, %c0_29, %c0_30] : memref<1x1x1x128xf32, #tpu.memory_space<vmem>>, vector<1x1x1x128xf32>
    %47 = vector.shape_cast %46 : vector<1x1x1x128xf32> to vector<1x128xf32>
    %48 = vector.shape_cast %45 : vector<1x128xf32> to vector<1x1x1x128xf32>
    tpu.vector_store %arg6[%c0_27, %c0_28, %c0_29, %c0_30], %48 {strides = array<i32>} : memref<1x1x1x128xf32, #tpu.memory_space<vmem>>, vector<1x1x1x128xf32>,
    return
  }
  func.func @transform_0(%arg0: i32, %arg1: i32) -> (i32, i32, i32, i32) {
    %c0_i32 = arith.constant 0 : i32
    %c0_i32_0 = arith.constant 0 : i32
    %c0_i32_1 = arith.constant 0 : i32
    return %arg0, %c0_i32, %arg1, %c0_i32_0 : i32, i32, i32, i32
  }
  func.func @transform_1(%arg0: i32, %arg1: i32) -> (i32, i32, i32) {
    %c0_i32 = arith.constant 0 : i32
    %c0_i32_0 = arith.constant 0 : i32
    return %arg0, %arg1, %c0_i32 : i32, i32, i32
  }
  func.func @transform_2(%arg0: i32, %arg1: i32) -> (i32, i32, i32, i32) {
    %c0_i32 = arith.constant 0 : i32
    %c0_i32_0 = arith.constant 0 : i32
    %c0_i32_1 = arith.constant 0 : i32
    return %arg0, %arg1, %c0_i32, %c0_i32_0 : i32, i32, i32, i32
  }
  func.func @transform_3(%arg0: i32, %arg1: i32) -> (i32, i32, i32, i32) {
    %c0_i32 = arith.constant 0 : i32
    %c0_i32_0 = arith.constant 0 : i32
    %c0_i32_1 = arith.constant 0 : i32
    return %arg0, %arg1, %c0_i32, %c0_i32_0 : i32, i32, i32, i32
  }
  func.func @transform_4(%arg0: i32, %arg1: i32) -> (i32, i32, i32, i32) {
    %c0_i32 = arith.constant 0 : i32
    %c0_i32_0 = arith.constant 0 : i32
    %c0_i32_1 = arith.constant 0 : i32
    return %arg0, %arg1, %c0_i32, %c0_i32_0 : i32, i32, i32, i32
  }
}

</mosaic_0001>

<llo_original>
// kernel: hybrid_loss.1
$region0: #{hybrid_loss.1}
  #allocation0 [shape = 'u32[]', space=smem, size = 0x4, offset = 0x4, fixed_abs, tag = 'smem constant byte address 0x4 - core index']
  #allocation1 [shape = 'u32[72,128]{1,0:T(1,128)}', space=vmem, size = 0x9000, scoped, tag = 'internal scratch']
  %s0 = inlined_call_operand.vmem [shape: f32[2,2,2,128], index: 0, kind: input, shape index: {}]
  %s1 = inlined_call_operand.vmem [shape: s32[2,2,128], index: 1, kind: input, shape index: {}]
  %s2 = inlined_call_operand.vmem [shape: f32[2,1,1,128], index: 2, kind: output, shape index: {0}]
  %s3 = inlined_call_operand.vmem [shape: f32[2,1,1,128], index: 3, kind: output, shape index: {1}]
  %s4 = inlined_call_operand.vmem [shape: f32[2,1,1,128], index: 4, kind: output, shape index: {2}]
  %5 = xla_tuple %s2, %s3, %s4
  %s6 = sld [smem:[#allocation0]]
  $region57: #{hybrid_loss.1} parent=0
    _
  %s8 = ssub.s32 1, %s6
  %s9 = scalar_select 0, %s8, %s6
  loop: start=0, step=1, limit=4
  $region2: #{hybrid_loss.1} parent=0 // loop_pre_header
    _
  $region3: #{hybrid_loss.1} parent=0 // loop_header
    %s11 = sphi 0, %s15
    %p12 = scmp.ge.s32.totalorder %s11, 4
    %s18 = sphi 0, %s30
    %s19 = sphi 0, %s26
    %s20 = sphi 0, %s18
    %s21 = sphi 0, %s19
    %s22 = sphi 0, %s20
    %s23 = sphi 0, %s21
    %s35 = sphi 0, %s37
    %s38 = sphi 0, %s35
    %s39 = sphi 0, %s38
    %s55 = sphi 0, %s39
    %s63 = sphi 0, %s65
    %s66 = sphi 0, %s63
    %s67 = sphi 0, %s66
    %s83 = sphi 0, %s67
    %s91 = sphi 0, %s93
    %s94 = sphi 0, %s91
    %s95 = sphi 0, %s94
    %s111 = sphi 0, %s95
    %s119 = sphi 0, %s121
    %s122 = sphi 0, %s119
    %s123 = sphi 0, %s122
    %s139 = sphi 0, %s123
    %s147 = sphi 0, %s149
    %s150 = sphi 0, %s147
    %s151 = sphi 0, %s150
    %s167 = sphi 0, %s151
  $region4: #{hybrid_loss.1} parent=0 // loop_header_branch
    %14 = sbr.rel (%p12) target = $region8
  $region5: #{hybrid_loss.1} parent=0 // loop_body
    %s16 = ssub.s32 %s11, 1
    %s17 = ssub.s32 %s11, 2
    %s24 = sadd.s32 1, %s19
    %p25 = scmp.ge.s32.totalorder %s24, 1
    %s26 = scalar_select %p25, 0, %s24
    %s27 = sadd.s32 1, %s18
    %s28 = scalar_select %p25, %s27, %s18
    %p29 = scmp.ge.s32.totalorder %s28, 2
    %s30 = scalar_select %p29, 0, %s28
    %s31 = ssub.s32 %s18, %s30
    %s32 = ssub.s32 %s19, %s26
    %s33 = sor.u32 %s31, %s32
    %p34 = scmp.eq.s32.totalorder %s33, 0
    %s36 = sadd.s32 %s35, 1
    %s37 = scalar_select %p34, %s35, %s36
    %p40 = pneg %p34
    %p41 = scmp.eq.s32.totalorder %s11, 1
    %p42 = por %p40, %p41
    %p43 = scmp.ne.s32.totalorder %s35, %s38
    %p44 = scmp.eq.s32.totalorder %s11, 0
    %p45 = por %p43, %p44
    %p46 = scmp.ne.s32.totalorder %s35, %s38
    %p47 = scmp.eq.s32.totalorder %s16, 1
    %p48 = por %p46, %p47
    %p49 = scmp.ne.s32.totalorder %s38, %s39
    %p50 = scmp.eq.s32.totalorder %s16, 0
    %p51 = por %p49, %p50
    %p52 = scmp.ne.s32.totalorder %s38, %s39
    %p53 = scmp.eq.s32.totalorder %s17, 1
    %p54 = por %p52, %p53
    %p56 = scmp.ne.s32.totalorder %s39, %s55
    %p57 = scmp.eq.s32.totalorder %s17, 0
    %p58 = por %p56, %p57
    %s59 = ssub.s32 %s18, %s30
    %s60 = ssub.s32 %s19, %s26
    %s61 = sor.u32 %s59, %s60
    %p62 = scmp.eq.s32.totalorder %s61, 0
    %s64 = sadd.s32 %s63, 1
    %s65 = scalar_select %p62, %s63, %s64
    %p68 = pneg %p62
    %p69 = scmp.eq.s32.totalorder %s11, 1
    %p70 = por %p68, %p69
    %p71 = scmp.ne.s32.totalorder %s63, %s66
    %p72 = scmp.eq.s32.totalorder %s11, 0
    %p73 = por %p71, %p72
    %p74 = scmp.ne.s32.totalorder %s63, %s66
    %p75 = scmp.eq.s32.totalorder %s16, 1
    %p76 = por %p74, %p75
    %p77 = scmp.ne.s32.totalorder %s66, %s67
    %p78 = scmp.eq.s32.totalorder %s16, 0
    %p79 = por %p77, %p78
    %p80 = scmp.ne.s32.totalorder %s66, %s67
    %p81 = scmp.eq.s32.totalorder %s17, 1
    %p82 = por %p80, %p81
    %p84 = scmp.ne.s32.totalorder %s67, %s83
    %p85 = scmp.eq.s32.totalorder %s17, 0
    %p86 = por %p84, %p85
    %s87 = ssub.s32 %s18, %s30
    %s88 = ssub.s32 %s19, %s26
    %s89 = sor.u32 %s87, %s88
    %p90 = scmp.eq.s32.totalorder %s89, 0
    %s92 = sadd.s32 %s91, 1
    %s93 = scalar_select %p90, %s91, %s92
    %p96 = pneg %p90
    %p97 = scmp.eq.s32.totalorder %s11, 1
    %p98 = por %p96, %p97
    %p99 = scmp.ne.s32.totalorder %s91, %s94
    %p100 = scmp.eq.s32.totalorder %s11, 0
    %p101 = por %p99, %p100
    %p102 = scmp.ne.s32.totalorder %s91, %s94
    %p103 = scmp.eq.s32.totalorder %s16, 1
    %p104 = por %p102, %p103
    %p105 = scmp.ne.s32.totalorder %s94, %s95
    %p106 = scmp.eq.s32.totalorder %s16, 0
    %p107 = por %p105, %p106
    %p108 = scmp.ne.s32.totalorder %s94, %s95
    %p109 = scmp.eq.s32.totalorder %s17, 1
    %p110 = por %p108, %p109
    %p112 = scmp.ne.s32.totalorder %s95, %s111
    %p113 = scmp.eq.s32.totalorder %s17, 0
    %p114 = por %p112, %p113
    %s115 = ssub.s32 %s18, %s30
    %s116 = ssub.s32 %s19, %s26
    %s117 = sor.u32 %s115, %s116
    %p118 = scmp.eq.s32.totalorder %s117, 0
    %s120 = sadd.s32 %s119, 1
    %s121 = scalar_select %p118, %s119, %s120
    %p124 = pneg %p118
    %p125 = scmp.eq.s32.totalorder %s11, 1
    %p126 = por %p124, %p125
    %p127 = scmp.ne.s32.totalorder %s119, %s122
    %p128 = scmp.eq.s32.totalorder %s11, 0
    %p129 = por %p127, %p128
    %p130 = scmp.ne.s32.totalorder %s119, %s122
    %p131 = scmp.eq.s32.totalorder %s16, 1
    %p132 = por %p130, %p131
    %p133 = scmp.ne.s32.totalorder %s122, %s123
    %p134 = scmp.eq.s32.totalorder %s16, 0
    %p135 = por %p133, %p134
    %p136 = scmp.ne.s32.totalorder %s122, %s123
    %p137 = scmp.eq.s32.totalorder %s17, 1
    %p138 = por %p136, %p137
    %p140 = scmp.ne.s32.totalorder %s123, %s139
    %p141 = scmp.eq.s32.totalorder %s17, 0
    %p142 = por %p140, %p141
    %s143 = ssub.s32 %s18, %s30
    %s144 = ssub.s32 %s19, %s26
    %s145 = sor.u32 %s143, %s144
    %p146 = scmp.eq.s32.totalorder %s145, 0
    %s148 = sadd.s32 %s147, 1
    %s149 = scalar_select %p146, %s147, %s148
    %p152 = pneg %p146
    %p153 = scmp.eq.s32.totalorder %s11, 1
    %p154 = por %p152, %p153
    %p155 = scmp.ne.s32.totalorder %s147, %s150
    %p156 = scmp.eq.s32.totalorder %s11, 0
    %p157 = por %p155, %p156
    %p158 = scmp.ne.s32.totalorder %s147, %s150
    %p159 = scmp.eq.s32.totalorder %s16, 1
    %p160 = por %p158, %p159
    %p161 = scmp.ne.s32.totalorder %s150, %s151
    %p162 = scmp.eq.s32.totalorder %s16, 0
    %p163 = por %p161, %p162
    %p164 = scmp.ne.s32.totalorder %s150, %s151
    %p165 = scmp.eq.s32.totalorder %s17, 1
    %p166 = por %p164, %p165
    %p168 = scmp.ne.s32.totalorder %s151, %s167
    %p169 = scmp.eq.s32.totalorder %s17, 0
    %p170 = por %p168, %p169
    %p171 = scmp.le.s32.totalorder 1, %s11
    %p172 = scmp.lt.s32.totalorder %s11, 3
    %p173 = pnand %p171, %p172
    %p174 = pneg %p173
    // Predicated region
    $region9: #{hybrid_loss.1} parent=5 // pred_check
      _
    $region10: #{hybrid_loss.1} parent=5 // pred_check_branch
      %176 = sbr.rel (%p173) target = $region12
    $region11: #{hybrid_loss.1} parent=5 // pred_region
      %s177 = ssub.s32 %s11, 1
    $region12: #{hybrid_loss.1} parent=5 // pred_fallthru
      _
    %p178 = scmp.lt.s32.totalorder %s11, 2
    // Predicated region
    $region13: #{hybrid_loss.1} parent=5 // pred_check
      %p179 = pneg %p178
    $region14: #{hybrid_loss.1} parent=5 // pred_check_branch
      %181 = sbr.rel (%p179) target = $region16
    $region15: #{hybrid_loss.1} parent=5 // pred_region
      // Predicated region
      $region17: #{hybrid_loss.1} parent=15 // pred_check
        %p182 = pneg %p45
      $region18: #{hybrid_loss.1} parent=15 // pred_check_branch
        %184 = sbr.rel (%p182) target = $region20
      $region19: #{hybrid_loss.1} parent=15 // pred_region
        %p185 = scmp.lt.s32.totalorder %s18, 1
        %s186 = scalar_select %p185, %s18, 1
        %p187 = scmp.lt.s32.totalorder %s19, 0
        %s188 = scalar_select %p187, %s19, 0
        %s189 = smul.addr %s186, 2
        %s190 = sadd.s32 %s188, %s189
        %s191 = smul.addr %s190, 2
        %s192 = scalar_lea.vmem %s0, %s191
      $region20: #{hybrid_loss.1} parent=15 // pred_fallthru
        _
      // Predicated region
      $region21: #{hybrid_loss.1} parent=15 // pred_check
        %p193 = pneg %p73
      $region22: #{hybrid_loss.1} parent=15 // pred_check_branch
        %195 = sbr.rel (%p193) target = $region24
      $region23: #{hybrid_loss.1} parent=15 // pred_region
        %p196 = scmp.lt.s32.totalorder %s18, 1
        %s197 = scalar_select %p196, %s18, 1
        %p198 = scmp.lt.s32.totalorder %s19, 0
        %s199 = scalar_select %p198, %s19, 0
        %s200 = sadd.s32 %s199, %s197
        %s201 = smul.addr %s200, 2
        %s202 = scalar_lea.vmem %s1, %s201
      $region24: #{hybrid_loss.1} parent=15 // pred_fallthru
        _
    $region16: #{hybrid_loss.1} parent=5 // pred_fallthru
      _
    %p203 = scmp.le.s32.totalorder 1, %s11
    %p204 = scmp.lt.s32.totalorder %s11, 3
    %p205 = pnand %p203, %p204
    %p206 = pneg %p205
    // Predicated region
    $region25: #{hybrid_loss.1} parent=5 // pred_check
      _
    $region26: #{hybrid_loss.1} parent=5 // pred_check_branch
      %208 = sbr.rel (%p205) target = $region28
    $region27: #{hybrid_loss.1} parent=5 // pred_region
      %s209 = ssub.s32 %s11, 1
      %p210 = scmp.lt.s32.totalorder %s20, 1
      %s211 = scalar_select %p210, %s20, 1
      %p212 = scmp.lt.s32.totalorder %s21, 0
      %s213 = scalar_select %p212, %s21, 0
      %s214 = smul.addr %s211, 2
      %s215 = sadd.s32 %s213, %s214
      %s216 = smul.addr %s215, 2
      %s217 = scalar_lea.vmem %s0, %s216
      %p218 = pneg %p51
      %p219 = pneg %p48
      %p220 = scmp.lt.s32.totalorder %s20, 1
      %s221 = scalar_select %p220, %s20, 1
      %p222 = scmp.lt.s32.totalorder %s21, 0
      %s223 = scalar_select %p222, %s21, 0
      %s224 = sadd.s32 %s223, %s221
      %s225 = smul.addr %s224, 2
      %s226 = scalar_lea.vmem %s1, %s225
      %p227 = pneg %p79
      %p228 = pneg %p76
      %p229 = pneg %p107
      %p230 = pneg %p104
      %p231 = scmp.lt.s32.totalorder %s20, 1
      %s232 = scalar_select %p231, %s20, 1
      %p233 = scmp.lt.s32.totalorder %s21, 0
      %s234 = scalar_select %p233, %s21, 0
      %s235 = sadd.s32 %s234, %s232
      %s236 = scalar_lea.vmem %s2, %s235
      %p237 = pneg %p135
      %p238 = pneg %p132
      %p239 = scmp.lt.s32.totalorder %s20, 1
      %s240 = scalar_select %p239, %s20, 1
      %p241 = scmp.lt.s32.totalorder %s21, 0
      %s242 = scalar_select %p241, %s21, 0
      %s243 = sadd.s32 %s242, %s240
      %s244 = scalar_lea.vmem %s3, %s243
      %p245 = pneg %p163
      %p246 = pneg %p160
      %p247 = scmp.lt.s32.totalorder %s20, 1
      %s248 = scalar_select %p247, %s20, 1
      %p249 = scmp.lt.s32.totalorder %s21, 0
      %s250 = scalar_select %p249, %s21, 0
      %s251 = sadd.s32 %s250, %s248
      %s252 = scalar_lea.vmem %s4, %s251
      %p253 = scmp.lt.s32.totalorder %s20, 1
      %s254 = scalar_select %p253, %s20, 1
      %p255 = scmp.lt.s32.totalorder %s21, 0
      %s256 = scalar_select %p255, %s21, 0
      %s257 = smul.addr %s254, 2
      %s258 = sadd.s32 %s256, %s257
      %s259 = smul.addr %s258, 2
      %s260 = scalar_lea.vmem %s0, %s259
      %p261 = scmp.lt.s32.totalorder %s20, 1
      %s262 = scalar_select %p261, %s20, 1
      %p263 = scmp.lt.s32.totalorder %s21, 0
      %s264 = scalar_select %p263, %s21, 0
      %s265 = sadd.s32 %s264, %s262
      %s266 = smul.addr %s265, 2
      %s267 = scalar_lea.vmem %s1, %s266
      %p268 = scmp.lt.s32.totalorder %s20, 1
      %s269 = scalar_select %p268, %s20, 1
      %p270 = scmp.lt.s32.totalorder %s21, 0
      %s271 = scalar_select %p270, %s21, 0
      %s272 = sadd.s32 %s271, %s269
      %s273 = scalar_lea.vmem %s2, %s272
      %p274 = scmp.lt.s32.totalorder %s20, 1
      %s275 = scalar_select %p274, %s20, 1
      %p276 = scmp.lt.s32.totalorder %s21, 0
      %s277 = scalar_select %p276, %s21, 0
      %s278 = sadd.s32 %s277, %s275
      %s279 = scalar_lea.vmem %s3, %s278
      %p280 = scmp.lt.s32.totalorder %s20, 1
      %s281 = scalar_select %p280, %s20, 1
      %p282 = scmp.lt.s32.totalorder %s21, 0
      %s283 = scalar_select %p282, %s21, 0
      %s284 = sadd.s32 %s283, %s281
      %s285 = scalar_lea.vmem %s4, %s284
      %v286 = vld [vmem:[%s260] sm:$0x3]
      %s287 = scalar_lea.vmem %s260, 2
      %v288 = vld [vmem:[%s287] sm:$0x3]
      %v289 = vld [vmem:[%s267] sm:$0x3]
      %vm290 = vcmp.gt.s32.totalorder %v289, 0
      %v291 = vsel %vm290, 1, 0
      %v292 = vcvt.s32.f32 %v291
      %v293 = vsub.f32 %v286, %v288
      %v294 = vsub.f32 0.0, %v293
      %v295 = vsel %vm290, %v293, %v294
      %v296 = vmax.f32 %v295, 0.0
      %v297 = vand.u32 2147483647, %v293
      %v298 = vsub.f32 0.0, %v297
      %v299 = vmul.f32 %v298, 1.442695
      %v300 = vpow.pop %v299
      %v301 = vadd.f32 %v300, 1.0
      %v302 = vlog2.pop %v301
      %v303 = vmul.f32 %v302, 0.6931472
      %v304 = vadd.f32 %v296, %v303
      %v305 = vmul.f32 %v288, 0.5
      %v306 = vtanh.pop %v305
      %v307 = vmul.f32 %v306, 0.5
      %v308 = vadd.f32 %v307, 0.5
      %vm309 = vcmask 1041408
      %v310 = vsel %vm309, %v304, 0.0
      %v311 = vrot.slane %v310, 4
      %v312 = vadd.f32 %v310, %v311
      %v313 = vrot.slane %v312, 2
      %v314 = vadd.f32 %v312, %v313
      %v315 = vrot.slane %v314, 1
      %v316 = vadd.f32 %v314, %v315
      %317 = vst [vmem:[%s273] sm:$0x1] %v316
      %v318 = vsel %vm290, %v308, 0.0
      %v319 = vsel %vm309, %v318, 0.0
      %v320 = vrot.slane %v319, 4
      %v321 = vadd.f32 %v319, %v320
      %v322 = vrot.slane %v321, 2
      %v323 = vadd.f32 %v321, %v322
      %v324 = vrot.slane %v323, 1
      %v325 = vadd.f32 %v323, %v324
      %326 = vst [vmem:[%s279] sm:$0x1] %v325
      %v327 = vadd.f32 %v308, %v292
      %v328 = vsel %vm309, %v327, 0.0
      %v329 = vrot.slane %v328, 4
      %v330 = vadd.f32 %v328, %v329
      %v331 = vrot.slane %v330, 2
      %v332 = vadd.f32 %v330, %v331
      %v333 = vrot.slane %v332, 1
      %v334 = vadd.f32 %v332, %v333
      %335 = vst [vmem:[%s285] sm:$0x1] %v334
      %p336 = scmp.lt.s32.totalorder %s20, 1
      %s337 = scalar_select %p336, %s20, 1
      %p338 = scmp.lt.s32.totalorder %s21, 0
      %s339 = scalar_select %p338, %s21, 0
      %s340 = sadd.s32 %s339, %s337
      %s341 = scalar_lea.vmem %s2, %s340
      %p342 = scmp.lt.s32.totalorder %s20, 1
      %s343 = scalar_select %p342, %s20, 1
      %p344 = scmp.lt.s32.totalorder %s21, 0
      %s345 = scalar_select %p344, %s21, 0
      %s346 = sadd.s32 %s345, %s343
      %s347 = scalar_lea.vmem %s3, %s346
      %p348 = scmp.lt.s32.totalorder %s20, 1
      %s349 = scalar_select %p348, %s20, 1
      %p350 = scmp.lt.s32.totalorder %s21, 0
      %s351 = scalar_select %p350, %s21, 0
      %s352 = sadd.s32 %s351, %s349
      %s353 = scalar_lea.vmem %s4, %s352
      // Predicated region
      $region29: #{hybrid_loss.1} parent=27 // pred_check
        %p354 = pneg %p104
      $region30: #{hybrid_loss.1} parent=27 // pred_check_branch
        %356 = sbr.rel (%p354) target = $region32
      $region31: #{hybrid_loss.1} parent=27 // pred_region
        _
      $region32: #{hybrid_loss.1} parent=27 // pred_fallthru
        _
      // Predicated region
      $region33: #{hybrid_loss.1} parent=27 // pred_check
        %p357 = pneg %p132
      $region34: #{hybrid_loss.1} parent=27 // pred_check_branch
        %359 = sbr.rel (%p357) target = $region36
      $region35: #{hybrid_loss.1} parent=27 // pred_region
        _
      $region36: #{hybrid_loss.1} parent=27 // pred_fallthru
        _
      // Predicated region
      $region37: #{hybrid_loss.1} parent=27 // pred_check
        %p360 = pneg %p160
      $region38: #{hybrid_loss.1} parent=27 // pred_check_branch
        %362 = sbr.rel (%p360) target = $region40
      $region39: #{hybrid_loss.1} parent=27 // pred_region
        _
      $region40: #{hybrid_loss.1} parent=27 // pred_fallthru
        _
    $region28: #{hybrid_loss.1} parent=5 // pred_fallthru
      _
    %p363 = scmp.le.s32.totalorder 2, %s11
    // Predicated region
    $region41: #{hybrid_loss.1} parent=5 // pred_check
      %p364 = pneg %p363
    $region42: #{hybrid_loss.1} parent=5 // pred_check_branch
      %366 = sbr.rel (%p364) target = $region44
    $region43: #{hybrid_loss.1} parent=5 // pred_region
      %s367 = ssub.s32 %s11, 2
      // Predicated region
      $region45: #{hybrid_loss.1} parent=43 // pred_check
        %p368 = pneg %p110
      $region46: #{hybrid_loss.1} parent=43 // pred_check_branch
        %370 = sbr.rel (%p368) target = $region48
      $region47: #{hybrid_loss.1} parent=43 // pred_region
        %p371 = scmp.lt.s32.totalorder %s22, 1
        %s372 = scalar_select %p371, %s22, 1
        %p373 = scmp.lt.s32.totalorder %s23, 0
        %s374 = scalar_select %p373, %s23, 0
        %s375 = sadd.s32 %s374, %s372
        %s376 = scalar_lea.vmem %s2, %s375
      $region48: #{hybrid_loss.1} parent=43 // pred_fallthru
        _
      // Predicated region
      $region49: #{hybrid_loss.1} parent=43 // pred_check
        %p377 = pneg %p138
      $region50: #{hybrid_loss.1} parent=43 // pred_check_branch
        %379 = sbr.rel (%p377) target = $region52
      $region51: #{hybrid_loss.1} parent=43 // pred_region
        %p380 = scmp.lt.s32.totalorder %s22, 1
        %s381 = scalar_select %p380, %s22, 1
        %p382 = scmp.lt.s32.totalorder %s23, 0
        %s383 = scalar_select %p382, %s23, 0
        %s384 = sadd.s32 %s383, %s381
        %s385 = scalar_lea.vmem %s3, %s384
      $region52: #{hybrid_loss.1} parent=43 // pred_fallthru
        _
      // Predicated region
      $region53: #{hybrid_loss.1} parent=43 // pred_check
        %p386 = pneg %p166
      $region54: #{hybrid_loss.1} parent=43 // pred_check_branch
        %388 = sbr.rel (%p386) target = $region56
      $region55: #{hybrid_loss.1} parent=43 // pred_region
        %p389 = scmp.lt.s32.totalorder %s22, 1
        %s390 = scalar_select %p389, %s22, 1
        %p391 = scmp.lt.s32.totalorder %s23, 0
        %s392 = scalar_select %p391, %s23, 0
        %s393 = sadd.s32 %s392, %s390
        %s394 = scalar_lea.vmem %s4, %s393
      $region56: #{hybrid_loss.1} parent=43 // pred_fallthru
        _
    $region44: #{hybrid_loss.1} parent=5 // pred_fallthru
      _
  $region6: #{hybrid_loss.1} parent=0 // loop_footer
    %s15 = sadd.s32 1, %s11
  $region7: #{hybrid_loss.1} parent=0 // loop_footer_branch
    %10 = sbr.rel target = $region3
  $region8: #{hybrid_loss.1} parent=0 // loop_exit
    _

</llo_original>
